<compile_context>
chip_gen: v7x
topology: tpu7x:2x2x1
jax: 0.10.0
libtpu: 0.0.40
codegen_flags: <defaults>
</compile_context>

<pallas_src>
import functools

import jax
import jax.numpy as jnp
from jax import lax
from jax.experimental import pallas as pl
from jax.experimental.pallas import tpu as pltpu


def _round_up(x, m):
    return ((x + m - 1) // m) * m


def _triplet_loss_kernel(x_ref, out_ref, acc_ref, *,
                         dst_tp, mrg, epsilon, d, num_tp, tile_n,
                         tiles_per_chunk):
    c = pl.program_id(0)   # chunk axis ("parallel"; shards across TCs on v7x)
    t = pl.program_id(1)   # tile axis inside a chunk ("arbitrary")

    @pl.when(t == 0)
    def _init():
        acc_ref[...] = jnp.zeros_like(acc_ref)

    # (tile_n, 3*D) block; widen to f32 in-kernel (input may be bf16 / f16).
    x = x_ref[...].astype(jnp.float32)
    anc = x[:, 0 * d:1 * d]          # static lane slices, no sublane gather
    pos = x[:, 1 * d:2 * d]
    neg = x[:, 2 * d:3 * d]

    if dst_tp == "l2":
        dp = anc - pos
        dn = anc - neg
        # Fused single row-reduction: sum((a-p)^2) - sum((a-n)^2).
        row = jnp.sum(dp * dp - dn * dn, axis=-1, keepdims=True)   # (tile_n,1)
    elif dst_tp == "angular":
        asq = jnp.sum(anc * anc, axis=-1, keepdims=True) + epsilon
        psq = jnp.sum(pos * pos, axis=-1, keepdims=True) + epsilon
        nsq = jnp.sum(neg * neg, axis=-1, keepdims=True) + epsilon
        cpos = jnp.abs(jnp.sum(anc * pos, axis=-1, keepdims=True))
        cneg = jnp.abs(jnp.sum(anc * neg, axis=-1, keepdims=True))
        # 1 - |a.b| / (|a||b|) == 1 - |a.b| * rsqrt(asq*bsq)  (EUP rsqrt)
        pos_dst = 1.0 - cpos * lax.rsqrt(asq * psq)
        neg_dst = 1.0 - cneg * lax.rsqrt(asq * nsq)
        row = pos_dst - neg_dst
    else:
        raise ValueError(f"unknown dst_tp: {dst_tp}")

    hinge = jnp.maximum(row + mrg, 0.0)                             # (tile_n,1)

    # Ragged / duplicated-tile mask. Uses the UNCLAMPED logical tile index so
    # rows past N (and the clamp-duplicated tile on the last chunk) contribute
    # exactly 0. Must stay a select applied AFTER the hinge (NaN-safe for the
    # angular path on unspecified padding rows).
    row_start = (c * tiles_per_chunk + t) * tile_n
    row_ids = row_start + lax.broadcasted_iota(jnp.int32, hinge.shape, 0)
    hinge = jnp.where(row_ids < num_tp, hinge, 0.0)

    # Steady state: pure VPU adds into a persistent per-row running sum.
    acc_ref[...] += hinge

    @pl.when(t == pl.num_programs(1) - 1)
    def _finalize():
        total = jnp.sum(acc_ref[...])                               # scalar
        out_ref[...] = jnp.broadcast_to(total.reshape(1, 1, 1), out_ref.shape)


def triplet_loss(triplet_tuples, dst_tp="l2", mrg=0.5, epsilon=1e-20, *,
                 tile_n=None):
    """Pallas equivalent of TripletLoss.forward. Returns a scalar f32."""
    n, three, d = triplet_tuples.shape
    assert three == 3, "expected (N, 3, D) triplet tuples"
    if not jnp.issubdtype(triplet_tuples.dtype, jnp.floating):
        triplet_tuples = triplet_tuples.astype(jnp.float32)

    # Free, contiguous reshape: anchor/pos/neg become static lane slices.
    x = triplet_tuples.reshape(n, 3 * d)
    itemsize = x.dtype.itemsize

    # Generation-aware VMEM budget: 128-MiB v5e/v6e -> 64-MiB limit,
    # 64-MiB v7x -> 32-MiB limit (fallback is the conservative 32 MiB).
    try:
        vmem_cap = int(pltpu.get_tpu_info().vmem_capacity_bytes)
    except Exception:
        vmem_cap = 64 * 1024 * 1024
    vmem_limit = min(vmem_cap // 2, 64 * 1024 * 1024)

    if tile_n is None:
        lane_row = _round_up(3 * d, 128)
        # double-buffered input rows + the f32 (tile_n, 1) accumulator rows
        per_row_bytes = 2 * lane_row * itemsize + 128 * 4
        budget = (vmem_limit * 3) // 4          # leave pipeline headroom
        tile_n = max(8, min(16384, (budget // per_row_bytes) // 8 * 8))
    if tile_n >= n:
        tile_n = n
    # Block second-minor dim must be a multiple of 8 or the full array dim.
    assert tile_n == n or tile_n % 8 == 0

    total_tiles = pl.cdiv(n, tile_n)
    # Unconditional 2-way chunk split when there is more than one tile: feeds
    # both v7x TensorCores regardless of tile-count parity. On single-TC parts
    # the extra chunk is just one more serial grid slice (negligible).
    # (If "parallel" does not shard across v7x TCs, switch axis 0 to
    #  pltpu.CORE_PARALLEL / a core_map split.)
    num_chunks = 2 if total_tiles >= 2 else 1
    tiles_per_chunk = pl.cdiv(total_tiles, num_chunks)

    def _row_block(c, t):
        # Clamp the fetched tile so out-of-range steps re-read the last real
        # tile; the in-kernel row mask (unclamped index) zeroes their rows.
        return jnp.minimum(c * tiles_per_chunk + t, total_tiles - 1)

    kernel = functools.partial(
        _triplet_loss_kernel,
        dst_tp=dst_tp, mrg=float(mrg), epsilon=float(epsilon), d=d,
        num_tp=n, tile_n=tile_n, tiles_per_chunk=tiles_per_chunk)

    flops_per_row = (6 if dst_tp == "l2" else 9) * d + 4
    cost = pl.CostEstimate(
        flops=int(n * flops_per_row),
        transcendentals=0 if dst_tp == "l2" else int(2 * n),
        bytes_accessed=int(n * 3 * d * itemsize + num_chunks * 8 * 128 * 4))

    partial_sums = pl.pallas_call(
        kernel,
        out_shape=jax.ShapeDtypeStruct((num_chunks, 8, 128), jnp.float32),
        grid_spec=pltpu.PrefetchScalarGridSpec(
            num_scalar_prefetch=0,
            grid=(num_chunks, tiles_per_chunk),
            in_specs=[pl.BlockSpec((tile_n, 3 * d),
                                   lambda c, t: (_row_block(c, t), 0))],
            out_specs=pl.BlockSpec((1, 8, 128), lambda c, t: (c, 0, 0)),
            scratch_shapes=[pltpu.VMEM((tile_n, 1), jnp.float32)]),
        compiler_params=pltpu.CompilerParams(
            dimension_semantics=("parallel", "arbitrary"),
            vmem_limit_bytes=int(vmem_limit)),
        cost_estimate=cost,
    )(x)

    # Tiny epilogue: combine per-chunk partial sums and divide by N.
    return jnp.sum(partial_sums[:, 0, 0]) / n


def _reference_loss(triplet_tuples, dst_tp="l2", mrg=0.5, epsilon=1e-20):
    """Pure-JAX reference mirroring the PyTorch forward."""
    anc = triplet_tuples[:, 0, :]
    pos = triplet_tuples[:, 1, :]
    neg = triplet_tuples[:, 2, :]
    n = anc.shape[0]
    if dst_tp == "l2":
        pos_dst = jnp.sum((anc - pos) ** 2, axis=-1)
        neg_dst = jnp.sum((anc - neg) ** 2, axis=-1)
    else:
        def ang(a, b):
            an = jnp.sqrt(jnp.sum(a * a, -1) + epsilon)
            bn = jnp.sqrt(jnp.sum(b * b, -1) + epsilon)
            return 1.0 - jnp.abs(jnp.sum(a * b, -1)) / (an * bn)
        pos_dst = ang(anc, pos)
        neg_dst = ang(anc, neg)
    return jnp.sum(jnp.maximum(pos_dst - neg_dst + mrg, 0.0), axis=-1) / n


if __name__ == "__main__":
    key = jax.random.PRNGKey(0)
    key_a, key_b = jax.random.split(key)

    # Small shapes consistent with the module: batch of 8 triplets, dim 32.
    N, D = 8, 32
    triplets = jax.random.normal(key_a, (N, 3, D), dtype=jnp.float32)

    # l2 (module default) and angular variants, f32 input.
    for tp in ("l2", "angular"):
        got = triplet_loss(triplets, dst_tp=tp, mrg=0.5)
        jax.block_until_ready(got)
        want = _reference_loss(triplets, dst_tp=tp, mrg=0.5)
        assert jnp.allclose(got, want, rtol=1e-4, atol=1e-4), (tp, got, want)

    # bf16 input path: no wrapper widening, f32 cast happens inside the kernel.
    trip_bf16 = triplets.astype(jnp.bfloat16)
    got = triplet_loss(trip_bf16, dst_tp="l2", mrg=0.5)
    jax.block_until_ready(got)
    want = _reference_loss(trip_bf16.astype(jnp.float32), dst_tp="l2", mrg=0.5)
    assert jnp.allclose(got, want, rtol=1e-4, atol=1e-4), (got, want)

    # Multi-tile + unconditional 2-chunk + ragged-mask path
    # (odd tile count, N not a multiple of the tile size).
    N2 = 37
    trip2 = jax.random.normal(key_b, (N2, 3, D), dtype=jnp.float32)
    for tp in ("l2", "angular"):
        got = triplet_loss(trip2, dst_tp=tp, mrg=0.5, tile_n=8)
        jax.block_until_ready(got)
        want = _reference_loss(trip2, dst_tp=tp, mrg=0.5)
        assert jnp.allclose(got, want, rtol=1e-4, atol=1e-4), (tp, got, want)

    print("KERNEL_OK")
</pallas_src>

<mosaic_0001>
module attributes {stable_mosaic.version = 11 : i64} {
  func.func @_triplet_loss_kernel(%arg0: i32, %arg1: i32, %arg2: memref<8x96xf32, #tpu.memory_space<vmem>>, %arg3: memref<1x8x128xf32, #tpu.memory_space<vmem>>, %arg4: memref<8x1xf32, #tpu.memory_space<vmem>>) attributes {dimension_semantics = [#tpu.dimension_semantics<parallel>, #tpu.dimension_semantics<arbitrary>], iteration_bounds = array<i64: 1, 1>, scalar_prefetch = 0 : i64, scratch_operands = 1 : i64, tpu.core_type = #tpu.core_type<tc>, window_params = [{transform_indices = @transform_0, window_bounds = array<i64: 8, 96>}, {transform_indices = @transform_1, window_bounds = array<i64: 1, 8, 128>}]} {
    %c0_i32 = arith.constant 0 : i32
    %0 = arith.cmpi eq, %arg1, %c0_i32 : i32
    %1 = arith.extui %0 : i1 to i32
    %c0_i32_0 = arith.constant 0 : i32
    %2 = arith.cmpi ne, %1, %c0_i32_0 : i32
    scf.if %2 {
      %cst_12 = arith.constant 0.000000e+00 : f32
      %34 = vector.broadcast %cst_12 : f32 to vector<8x1xf32>
      %c0_13 = arith.constant 0 : index
      %c0_14 = arith.constant 0 : index
      %35 = vector.load %arg4[%c0_13, %c0_14] : memref<8x1xf32, #tpu.memory_space<vmem>>, vector<8x1xf32>
      tpu.vector_store %arg4[%c0_13, %c0_14], %34 {strides = array<i32>} : memref<8x1xf32, #tpu.memory_space<vmem>>, vector<8x1xf32>,
    } else {
    }
    %c0 = arith.constant 0 : index
    %c0_1 = arith.constant 0 : index
    %3 = vector.load %arg2[%c0, %c0_1] : memref<8x96xf32, #tpu.memory_space<vmem>>, vector<8x96xf32>
    %4 = vector.extract_strided_slice %3 {offsets = [0, 0], sizes = [8, 32], strides = [1, 1]} : vector<8x96xf32> to vector<8x32xf32>
    %5 = vector.extract_strided_slice %3 {offsets = [0, 32], sizes = [8, 32], strides = [1, 1]} : vector<8x96xf32> to vector<8x32xf32>
    %6 = vector.extract_strided_slice %3 {offsets = [0, 64], sizes = [8, 32], strides = [1, 1]} : vector<8x96xf32> to vector<8x32xf32>
    %7 = arith.subf %4, %5 : vector<8x32xf32>
    %8 = arith.subf %4, %6 : vector<8x32xf32>
    %9 = arith.mulf %7, %7 : vector<8x32xf32>
    %10 = arith.mulf %8, %8 : vector<8x32xf32>
    %11 = arith.subf %9, %10 : vector<8x32xf32>
    %cst = arith.constant dense<0.000000e+00> : vector<8xf32>
    %12 = vector.multi_reduction <add>, %11, %cst [1] : vector<8x32xf32> to vector<8xf32>
    %13 = vector.shape_cast %12 : vector<8xf32> to vector<8x1xf32>
    %cst_2 = arith.constant 5.000000e-01 : f32
    %14 = vector.broadcast %cst_2 : f32 to vector<8x1xf32>
    %15 = arith.addf %13, %14 : vector<8x1xf32>
    %cst_3 = arith.constant 0.000000e+00 : f32
    %16 = vector.broadcast %cst_3 : f32 to vector<8x1xf32>
    %17 = arith.maximumf %15, %16 : vector<8x1xf32>
    %c1_i32 = arith.constant 1 : i32
    %18 = arith.muli %arg0, %c1_i32 : i32
    %19 = arith.addi %18, %arg1 : i32
    %c8_i32 = arith.constant 8 : i32
    %20 = arith.muli %19, %c8_i32 : i32
    %21 = tpu.iota {dimensions = array<i32: 0>} : vector<8x1xi32>
    %22 = vector.broadcast %20 : i32 to vector<8x1xi32>
    %23 = arith.addi %22, %21 : vector<8x1xi32>
    %c8_i32_4 = arith.constant 8 : i32
    %24 = vector.broadcast %c8_i32_4 : i32 to vector<8x1xi32>
    %25 = arith.cmpi slt, %23, %24 : vector<8x1xi32>
    %cst_5 = arith.constant 0.000000e+00 : f32
    %26 = vector.broadcast %cst_5 : f32 to vector<8x1xf32>
    %27 = arith.select %25, %17, %26 : vector<8x1xi1>, vector<8x1xf32>
    %c0_6 = arith.constant 0 : index
    %c0_7 = arith.constant 0 : index
    %28 = vector.load %arg4[%c0_6, %c0_7] : memref<8x1xf32, #tpu.memory_space<vmem>>, vector<8x1xf32>
    %29 = arith.addf %28, %27 : vector<8x1xf32>
    %c0_8 = arith.constant 0 : index
    %c0_9 = arith.constant 0 : index
    %30 = vector.load %arg4[%c0_8, %c0_9] : memref<8x1xf32, #tpu.memory_space<vmem>>, vector<8x1xf32>
    tpu.vector_store %arg4[%c0_8, %c0_9], %29 {strides = array<i32>} : memref<8x1xf32, #tpu.memory_space<vmem>>, vector<8x1xf32>,
    %c0_i32_10 = arith.constant 0 : i32
    %31 = arith.cmpi eq, %arg1, %c0_i32_10 : i32
    %32 = arith.extui %31 : i1 to i32
    %c0_i32_11 = arith.constant 0 : i32
    %33 = arith.cmpi ne, %32, %c0_i32_11 : i32
    scf.if %33 {
      %c0_12 = arith.constant 0 : index
      %c0_13 = arith.constant 0 : index
      %34 = vector.load %arg4[%c0_12, %c0_13] : memref<8x1xf32, #tpu.memory_space<vmem>>, vector<8x1xf32>
      %35 = vector.shape_cast %34 : vector<8x1xf32> to vector<1x8x1xf32>
      %cst_14 = arith.constant dense<0.000000e+00> : vector<1xf32>
      %36 = vector.multi_reduction <add>, %35, %cst_14 [1, 2] : vector<1x8x1xf32> to vector<1xf32>
      %37 = vector.shape_cast %36 : vector<1xf32> to vector<1x1x1xf32>
      %38 = vector.extract %37[0, 0, 0] : f32 from vector<1x1x1xf32>
      %39 = vector.broadcast %38 : f32 to vector<1x1x1xf32>
      %40 = vector.shape_cast %39 : vector<1x1x1xf32> to vector<1x1x1xf32>
      %41 = vector.broadcast %40 : vector<1x1x1xf32> to vector<1x8x128xf32>
      %c0_15 = arith.constant 0 : index
      %c0_16 = arith.constant 0 : index
      %c0_17 = arith.constant 0 : index
      %42 = vector.load %arg3[%c0_15, %c0_16, %c0_17] : memref<1x8x128xf32, #tpu.memory_space<vmem>>, vector<1x8x128xf32>
      tpu.vector_store %arg3[%c0_15, %c0_16, %c0_17], %41 {strides = array<i32>} : memref<1x8x128xf32, #tpu.memory_space<vmem>>, vector<1x8x128xf32>,
    } else {
    }
    return
  }
  func.func @transform_0(%arg0: i32, %arg1: i32) -> (i32, i32) {
    %c1_i32 = arith.constant 1 : i32
    %0 = arith.muli %arg0, %c1_i32 : i32
    %1 = arith.addi %0, %arg1 : i32
    %c0_i32 = arith.constant 0 : i32
    %2 = arith.minsi %1, %c0_i32 : i32
    %c0_i32_0 = arith.constant 0 : i32
    %c0_i32_1 = arith.constant 0 : i32
    return %2, %c0_i32_0 : i32, i32
  }
  func.func @transform_1(%arg0: i32, %arg1: i32) -> (i32, i32, i32) {
    %c0_i32 = arith.constant 0 : i32
    %c0_i32_0 = arith.constant 0 : i32
    %c0_i32_1 = arith.constant 0 : i32
    return %arg0, %c0_i32, %c0_i32_0 : i32, i32, i32
  }
}

</mosaic_0001>

<llo_original>
// kernel: tpu_custom_call.1
$region0: #{tpu_custom_call.1}
  #allocation0 [shape = 'u32[]', space=smem, size = 0x4, offset = 0x4, fixed_abs, tag = 'smem constant byte address 0x4 - core index']
  #allocation1 [shape = 'u32[144,128]{1,0:T(1,128)}', space=vmem, size = 0x12000, scoped, tag = 'internal scratch']
  #allocation2 [shape = 'f32[8,1]{1,0:T(8,128)}', space=vmem, size = 0x1000, scoped, tag = 'scratch operand']
  %s0 = inlined_call_operand.hbm [shape: f32[8,96], index: 0, kind: input, shape index: {}]
  %s1 = inlined_call_operand.hbm [shape: f32[1,8,128], index: 1, kind: output, shape index: {}]
  %s2 = sld [smem:[#allocation0]]
  $region26: #{tpu_custom_call.1} parent=0
    _
  %s4 = ssub.s32 1, %s2
  %s5 = scalar_select 0, %s4, %s2
  $region1: #{tpu_custom_call.1} parent=0
    #allocation3 [shape = 'u8[4096]{0}', space=vmem, size = 0x1000, scoped, tag = 'input window, operand 0, single buffered']
    #allocation4 [shape = 's32[1]{0}', space=sflag, size = 0x4, scoped, tag = 'scoped memory for tpu_custom_call.1']
    #allocation5 [shape = 's32[1]{0}', space=sflag, size = 0x4, scoped, tag = 'scoped memory for tpu_custom_call.1']
    #allocation6 [shape = 'u8[4096]{0}', space=vmem, size = 0x1000, scoped, tag = 'output window, operand 0, single buffered']
    %6 = vsyncpa [#allocation4], 0
    %7 = vsyncpa [#allocation5], 0
    // Predicated region
    $region2: #{tpu_custom_call.1} parent=1 // pred_check
      _
    $region3: #{tpu_custom_call.1} parent=1 // pred_check_branch
      %9 = sbr.rel (0) target = $region5
    $region4: #{tpu_custom_call.1} parent=1 // pred_region
      %s10 = sadd.s32 0, 0
      %p11 = scmp.lt.s32.totalorder %s10, 0
      %s12 = scalar_select %p11, %s10, 0
      %s14 = ssub.s32 128, 128
      %15 = vsyncadd [#allocation4], %s14
      %s16 = smul.addr %s12, 128
      %s17 = scalar_lea.hbm %s0, %s16
      %s19 = sshll.u32 [#allocation3], 4
      %s20 = int_to_ptr.vmem [resolvable:$true] %s19
      %22 = dma.hbm_to_vmem [thread:$0]  %s17, 128, %s20, [#allocation4]
    $region5: #{tpu_custom_call.1} parent=1 // pred_fallthru
      _
    // Predicated region
    $region6: #{tpu_custom_call.1} parent=1 // pred_check
      _
    $region7: #{tpu_custom_call.1} parent=1 // pred_check_branch
      %24 = sbr.rel (0) target = $region9
    $region8: #{tpu_custom_call.1} parent=1 // pred_region
      %25 = dma.done [#allocation4], 128
    $region9: #{tpu_custom_call.1} parent=1 // pred_fallthru
      _
    %s26 = sadd.s32 0, 0
    %p27 = scmp.lt.s32.totalorder %s26, 0
    %s28 = scalar_select %p27, %s26, 0
    %p29 = scmp.eq.s32.totalorder 0, 0
    // Predicated region
    $region10: #{tpu_custom_call.1} parent=1 // pred_check
      %p30 = pneg %p29
    $region11: #{tpu_custom_call.1} parent=1 // pred_check_branch
      %32 = sbr.rel (%p30) target = $region13
    $region12: #{tpu_custom_call.1} parent=1 // pred_region
      %vm33 = vcmask 7168
      %34 = vst.msk [vmem:[#allocation2] sm:$0xff] %vm33, 0.0
    $region13: #{tpu_custom_call.1} parent=1 // pred_fallthru
      _
    %v35 = vld [vmem:[#allocation3] sm:$0xff]
    %37 = vrot.lane.b32.xlu0 %v35, 96
    %v38 = vpop.permute.xlu0 %37
    %v40 = vsub.f32 %v35, %v38
    %41 = vrot.lane.b32.xlu0 %v35, 64
    %v42 = vpop.permute.xlu0 %41
    %v44 = vsub.f32 %v35, %v42
    %v45 = vmul.f32 %v40, %v40
    %v46 = vmul.f32 %v44, %v44
    %v47 = vsub.f32 %v45, %v46
    %vm48 = vcmask 261120
    %v49 = vsel %vm48, %v47, 0.0
    %50 = vadd.xlane.f32.xlu0 %v49
    %v51 = vpop.xlane.xlu0 %50
    %v52 = vadd.f32 %v51, 0.5
    %v53 = vmax.f32 %v52, 0.0
    %s54 = sadd.s32 0, 0
    %s55 = smul.u32 %s54, 8
    %v56 = vlaneseq
    %v57 = vshrl.u32 %v56, 7
    %v58 = vstv %s55
    %v59 = vadd.s32 %v58, %v57
    %vm60 = vcmp.lt.s32.totalorder %v59, 8
    %v61 = vsel %vm60, %v53, 0.0
    %v62 = vld [vmem:[#allocation2] sm:$0xff]
    %v63 = vadd.f32 %v62, %v61
    %vm64 = vcmask 7168
    %65 = vst.msk [vmem:[#allocation2] sm:$0xff] %vm64, %v63
    // Predicated region
    $region14: #{tpu_custom_call.1} parent=1 // pred_check
      %p66 = pneg %p29
    $region15: #{tpu_custom_call.1} parent=1 // pred_check_branch
      %68 = sbr.rel (%p66) target = $region17
    $region16: #{tpu_custom_call.1} parent=1 // pred_region
      %v69 = vld [vmem:[#allocation2] sm:$0xff]
      %v70 = vsel %vm64, %v69, 0.0
      %71 = vadd.xlane.f32.xlu0 %v70
      %v72 = vpop.xlane.xlu0 %71
      %v73 = vrot.slane %v72, 4
      %v74 = vadd.f32 %v72, %v73
      %v75 = vrot.slane %v74, 2
      %v76 = vadd.f32 %v74, %v75
      %v77 = vrot.slane %v76, 1
      %v78 = vadd.f32 %v76, %v77
      %s79 = vtos %v78
      %v80 = vstv %s79
      %81 = vst [vmem:[#allocation6] sm:$0xff] %v80
    $region17: #{tpu_custom_call.1} parent=1 // pred_fallthru
      _
    // Predicated region
    $region18: #{tpu_custom_call.1} parent=1 // pred_check
      _
    $region19: #{tpu_custom_call.1} parent=1 // pred_check_branch
      %83 = sbr.rel (0) target = $region21
    $region20: #{tpu_custom_call.1} parent=1 // pred_region
      %s85 = ssub.s32 128, 128
      %86 = vsyncadd [#allocation5], %s85
      %s88 = sshll.u32 [#allocation6], 4
      %s89 = int_to_ptr.vmem [resolvable:$true] %s88
      %91 = dma.vmem_to_hbm [thread:$0]  %s89, 128, %s1, [#allocation5]
    $region21: #{tpu_custom_call.1} parent=1 // pred_fallthru
      _
    // Predicated region
    $region22: #{tpu_custom_call.1} parent=1 // pred_check
      _
    $region23: #{tpu_custom_call.1} parent=1 // pred_check_branch
      %93 = sbr.rel (0) target = $region25
    $region24: #{tpu_custom_call.1} parent=1 // pred_region
      %94 = dma.done [#allocation5], 128
    $region25: #{tpu_custom_call.1} parent=1 // pred_fallthru
      _
    %95 = vsyncpa [#allocation4], 1
    %96 = vsyncpa [#allocation5], 1

</llo_original>
